<compile_context>
chip_gen: v5e
topology: v5e:2x2
jax: 0.10.0
libtpu: 0.0.40
codegen_flags: <defaults>
</compile_context>

<pallas_src>
import jax
import jax.numpy as jnp
from jax.experimental import pallas as pl
from jax.experimental.pallas import tpu as pltpu


def generate_filter(start, end, size):
    """Band-pass mask: 1.0 where start < i+j <= end, else 0.0."""
    return [
        [0.0 if i + j > end or i + j <= start else 1.0 for j in range(size)]
        for i in range(size)
    ]


def _make_filter_kernel(sub_rows):
    """Kernel body: one multiply per tile.

    sub_rows == 1 : plain (R, L) * (1, L) broadcast multiply.
    sub_rows  > 1 : x is split (R, L) -> (R//S, S, L) (free major-dim split,
                    S = sublane packing) and multiplied by the fully populated
                    (S, L) filter; broadcast is over the major dim only.
    """
    if sub_rows == 1:
        def kernel(x_ref, f_ref, o_ref):
            o_ref[...] = x_ref[...] * f_ref[...]
    else:
        def kernel(x_ref, f_ref, o_ref):
            x = x_ref[...]
            r, lan = x.shape
            o_ref[...] = (
                x.reshape(r // sub_rows, sub_rows, lan) * f_ref[...]
            ).reshape(r, lan)
    return kernel


def _vmem_capacity_bytes():
    """Generation-aware VMEM capacity (fallback: v7x's 64 MiB, the smallest)."""
    try:
        info = pltpu.get_tpu_info()
        cap = getattr(info, "vmem_capacity_bytes", None)
        if cap:
            return int(cap)
    except Exception:
        pass
    return 64 << 20


def _pick_row_block(rows, row_bytes, sublane, tile_budget_bytes,
                    min_tile_bytes=512 << 10, min_steps=4):
    """Pick the row-block size R (a multiple of `sublane`).

    Preference order among candidates in [~512 KiB .. tile budget]:
      1. grid length >= min_steps  (enables DMA/compute overlap)
      2. R divides rows exactly    (no ragged masked-store tail block)
      3. even grid length          (keeps both v7x TensorCores busy)
      4. largest R                 (amortize the ~0.35 us per-step overhead)
    """
    if sublane <= 1 or rows <= sublane or rows % sublane != 0:
        return rows

    max_rows = (tile_budget_bytes // max(row_bytes, 1)) // sublane * sublane
    max_rows = max(sublane, min(max_rows, rows))
    min_rows = -(-min_tile_bytes // max(row_bytes, 1))
    min_rows = -(-min_rows // sublane) * sublane
    min_rows = max(sublane, min(min_rows, max_rows))

    # Whole input smaller than one useful tile: splitting only adds per-step
    # overhead, no pipelining to gain -> single block.
    if rows <= min_rows:
        return rows

    best_r, best_score = rows, None
    r = min_rows
    while r <= max_rows:
        steps = -(-rows // r)
        score = (
            steps >= min_steps,   # enough steps to pipeline
            rows % r == 0,        # exact division
            steps % 2 == 0,       # even grid (v7x megacore)
            r,                    # then biggest tile
        )
        if best_score is None or score > best_score:
            best_score, best_r = score, r
        r += sublane
    return best_r


def filter_forward(x, base, learnable, *, norm=False, use_learnable=True,
                   use_pallas=None):
    """x: (N, C, H, W); base/learnable: (H, W). Matches Filter.forward."""
    N, C, H, W = x.shape
    dtype = x.dtype
    itemsize = jnp.dtype(dtype).itemsize

    # ---- Fold ALL filter math once, outside the kernel ----
    if use_learnable:
        filt = base + (2.0 * jax.nn.sigmoid(learnable) - 1.0)
    else:
        filt = base
    if norm:
        # ft_num = sum(base), exactly as in the module. NOTE: an empty band
        # mask (band_start >= band_end) gives 0 -> inf/nan, same as torch.
        filt = filt / jnp.sum(base)
    filt = filt.astype(dtype)
    # TODO(synk): for bf16 x the torch reference promotes x*filt to f32; we keep
    # the multiply in x.dtype (halves HBM traffic, tiny precision difference).

    total_bytes = x.size * itemsize
    if use_pallas is None:
        # pallas_call fixed overhead dominates tiny inputs; let XLA fuse them.
        use_pallas = total_bytes >= (256 << 10)
    if not use_pallas:
        return x * filt

    # ---- Lane-dense packing: lane axis = k * (H*W), a multiple of 128 ----
    rows0, hw = N * C, H * W
    k = 1
    if hw % 128 != 0:
        for cand in range(1, min(rows0, 128) + 1):
            if rows0 % cand == 0 and (cand * hw) % 128 == 0:
                k = cand
                break
        # If no k found we fall through with k=1: block last dim == full array
        # dim is still legal, just uses masked partial stores.
    rows, lanes = rows0 // k, k * hw
    x_flat = x.reshape(rows, lanes)
    filt_row = filt.reshape(1, hw)
    if k > 1:
        filt_row = jnp.tile(filt_row, (1, k))

    # ---- dtype-aware sublane packing multiple ----
    packing = {4: 8, 2: 16, 1: 32}.get(itemsize, 8)
    if rows % packing == 0:
        S = packing
    elif rows % 8 == 0:
        S = 8
    else:
        S = 1  # single full-array block; plain broadcast multiply
    filt_tile = jnp.broadcast_to(filt_row, (S, lanes)) if S > 1 else filt_row

    # ---- Generation-aware tile budget / row-block / VMEM limit ----
    cap = _vmem_capacity_bytes()
    tile_budget = max(2 << 20, min(8 << 20, cap // 8))
    row_bytes = lanes * itemsize
    R = _pick_row_block(rows, row_bytes, S, tile_budget) if S > 1 else rows
    grid = (pl.cdiv(rows, R),)

    tile_bytes = R * row_bytes
    # 2x double-buffered input + 2x output tiles + filter + slack.
    vmem_limit = 4 * tile_bytes + 2 * S * row_bytes + (2 << 20)
    vmem_limit = max(vmem_limit, 16 << 20)

    bytes_accessed = 2 * rows * lanes * itemsize + S * lanes * itemsize

    out = pl.pallas_call(
        _make_filter_kernel(S),
        out_shape=jax.ShapeDtypeStruct((rows, lanes), dtype),
        grid=grid,
        in_specs=[
            pl.BlockSpec((R, lanes), lambda i: (i, 0)),  # x row-block
            pl.BlockSpec((S, lanes), lambda i: (0, 0)),  # resident filter tile
        ],
        out_specs=pl.BlockSpec((R, lanes), lambda i: (i, 0)),
        compiler_params=pltpu.CompilerParams(
            dimension_semantics=("parallel",),
            vmem_limit_bytes=int(vmem_limit),
        ),
        cost_estimate=pl.CostEstimate(
            flops=rows * lanes,
            transcendentals=0,
            bytes_accessed=bytes_accessed,
        ),
    )(x_flat, filt_tile)

    return out.reshape(N, C, H, W)


def reference_forward(x, base, learnable, *, norm=False, use_learnable=True):
    if use_learnable:
        filt = base + (2.0 * jax.nn.sigmoid(learnable) - 1.0)
    else:
        filt = base
    y = x * filt
    if norm:
        y = y / jnp.sum(base)
    return y


if __name__ == "__main__":
    size = 16
    band_start, band_end = 0, 16  # low/mid band-pass mask
    N, C = 2, 4

    key = jax.random.PRNGKey(0)
    kx, kl = jax.random.split(key)

    # Matches the module's __init__: base = fixed band mask (size, size);
    # learnable ~ N(0, 0.1) (size, size).
    base = jnp.asarray(generate_filter(band_start, band_end, size), dtype=jnp.float32)
    learnable = 0.1 * jax.random.normal(kl, (size, size), dtype=jnp.float32)

    x = jax.random.normal(kx, (N, C, size, size), dtype=jnp.float32)

    for norm in (False, True):
        for use_learnable in (True, False):
            y = jax.block_until_ready(
                filter_forward(x, base, learnable, norm=norm,
                               use_learnable=use_learnable, use_pallas=True)
            )
            y_ref = reference_forward(x, base, learnable, norm=norm,
                                      use_learnable=use_learnable)
            assert y.shape == x.shape
            assert jnp.allclose(y, y_ref, atol=1e-5, rtol=1e-5), (norm, use_learnable)

    print("KERNEL_OK")
</pallas_src>

<mosaic_0001>
module attributes {stable_mosaic.version = 11 : i64} {
  func.func @kernel(%arg0: i32, %arg1: memref<8x256xf32, #tpu.memory_space<vmem>>, %arg2: memref<8x256xf32, #tpu.memory_space<vmem>>, %arg3: memref<8x256xf32, #tpu.memory_space<vmem>>) attributes {dimension_semantics = [#tpu.dimension_semantics<parallel>], iteration_bounds = array<i64: 1>, scalar_prefetch = 0 : i64, scratch_operands = 0 : i64, tpu.core_type = #tpu.core_type<tc>, window_params = [{transform_indices = @transform_0, window_bounds = array<i64: 8, 256>}, {pipeline_mode = #tpu.pipeline_mode<synchronous>, transform_indices = @transform_1, window_bounds = array<i64: 8, 256>}, {transform_indices = @transform_2, window_bounds = array<i64: 8, 256>}]} {
    %c0 = arith.constant 0 : index
    %c0_0 = arith.constant 0 : index
    %0 = vector.load %arg1[%c0, %c0_0] : memref<8x256xf32, #tpu.memory_space<vmem>>, vector<8x256xf32>
    %1 = vector.shape_cast %0 : vector<8x256xf32> to vector<1x8x256xf32>
    %c0_1 = arith.constant 0 : index
    %c0_2 = arith.constant 0 : index
    %2 = vector.load %arg2[%c0_1, %c0_2] : memref<8x256xf32, #tpu.memory_space<vmem>>, vector<8x256xf32>
    %3 = vector.shape_cast %2 : vector<8x256xf32> to vector<1x8x256xf32>
    %4 = arith.mulf %1, %3 : vector<1x8x256xf32>
    %5 = vector.shape_cast %4 : vector<1x8x256xf32> to vector<8x256xf32>
    %c0_3 = arith.constant 0 : index
    %c0_4 = arith.constant 0 : index
    %6 = vector.load %arg3[%c0_3, %c0_4] : memref<8x256xf32, #tpu.memory_space<vmem>>, vector<8x256xf32>
    tpu.vector_store %arg3[%c0_3, %c0_4], %5 {strides = array<i32>} : memref<8x256xf32, #tpu.memory_space<vmem>>, vector<8x256xf32>,
    return
  }
  func.func @transform_0(%arg0: i32) -> (i32, i32) {
    %c0_i32 = arith.constant 0 : i32
    %c0_i32_0 = arith.constant 0 : i32
    return %arg0, %c0_i32 : i32, i32
  }
  func.func @transform_1(%arg0: i32) -> (i32, i32) {
    %c0_i32 = arith.constant 0 : i32
    %c0_i32_0 = arith.constant 0 : i32
    %c0_i32_1 = arith.constant 0 : i32
    return %c0_i32, %c0_i32_0 : i32, i32
  }
  func.func @transform_2(%arg0: i32) -> (i32, i32) {
    %c0_i32 = arith.constant 0 : i32
    %c0_i32_0 = arith.constant 0 : i32
    return %arg0, %c0_i32 : i32, i32
  }
}

</mosaic_0001>

<llo_original>
// kernel: tpu_custom_call.1
$region0: #{tpu_custom_call.1}
  #allocation0 [shape = 'u32[]', space=smem, size = 0x4, offset = 0x4, fixed_abs, tag = 'smem constant byte address 0x4 - core index']
  #allocation1 [shape = 'u32[72,128]{1,0:T(1,128)}', space=vmem, size = 0x9000, scoped, tag = 'internal scratch']
  %s0 = inlined_call_operand.hbm [shape: f32[8,256], index: 0, kind: input, shape index: {}]
  %s1 = inlined_call_operand.hbm [shape: f32[8,256], index: 1, kind: input, shape index: {}]
  %s2 = inlined_call_operand.hbm [shape: f32[8,256], index: 2, kind: output, shape index: {}]
  %s3 = sld [smem:[#allocation0]]
  $region26: #{tpu_custom_call.1} parent=0
    _
  %s5 = ssub.s32 1, %s3
  %s6 = scalar_select 0, %s5, %s3
  $region1: #{tpu_custom_call.1} parent=0
    #allocation2 [shape = 'u8[8192]{0}', space=vmem, size = 0x2000, scoped, tag = 'input window, operand 0, single buffered']
    #allocation3 [shape = 's32[1]{0}', space=sflag, size = 0x4, scoped, tag = 'scoped memory for tpu_custom_call.1']
    #allocation4 [shape = 's32[1]{0}', space=sflag, size = 0x4, scoped, tag = 'scoped memory for tpu_custom_call.1']
    #allocation5 [shape = 'u8[8192]{0}', space=vmem, size = 0x2000, scoped, tag = 'input window, operand 1, single buffered']
    #allocation6 [shape = 's32[1]{0}', space=sflag, size = 0x4, scoped, tag = 'scoped memory for tpu_custom_call.1']
    #allocation7 [shape = 'u8[8192]{0}', space=vmem, size = 0x2000, scoped, tag = 'output window, operand 0, single buffered']
    %7 = vsyncpa [#allocation3], 0
    %8 = vsyncpa [#allocation6], 0
    %9 = vsyncpa [#allocation4], 0
    // Predicated region
    $region2: #{tpu_custom_call.1} parent=1 // pred_check
      _
    $region3: #{tpu_custom_call.1} parent=1 // pred_check_branch
      %11 = sbr.rel (0) target = $region5
    $region4: #{tpu_custom_call.1} parent=1 // pred_region
      %13 = vsyncadd [#allocation3], 0
      %s15 = sshll.u32 %s0, 4
      %s16 = int_to_ptr.hbm [resolvable:$true] %s15
      %s17 = sshll.u32 [#allocation2], 4
      %s18 = int_to_ptr.vmem [resolvable:$true] %s17
      %20 = dma.hbm_to_vmem [thread:$0]  %s16, 256, %s18, [#allocation3]
    $region5: #{tpu_custom_call.1} parent=1 // pred_fallthru
      _
    // Predicated region
    $region6: #{tpu_custom_call.1} parent=1 // pred_check
      _
    $region7: #{tpu_custom_call.1} parent=1 // pred_check_branch
      %22 = sbr.rel (0) target = $region9
    $region8: #{tpu_custom_call.1} parent=1 // pred_region
      %24 = vsyncadd [#allocation6], 0
      %s26 = sshll.u32 %s1, 4
      %s27 = int_to_ptr.hbm [resolvable:$true] %s26
      %s28 = sshll.u32 [#allocation5], 4
      %s29 = int_to_ptr.vmem [resolvable:$true] %s28
      %31 = dma.hbm_to_vmem [thread:$0]  %s27, 256, %s29, [#allocation6]
    $region9: #{tpu_custom_call.1} parent=1 // pred_fallthru
      _
    // Predicated region
    $region10: #{tpu_custom_call.1} parent=1 // pred_check
      _
    $region11: #{tpu_custom_call.1} parent=1 // pred_check_branch
      %33 = sbr.rel (0) target = $region13
    $region12: #{tpu_custom_call.1} parent=1 // pred_region
      %35 = dma.done [#allocation3], 256
    $region13: #{tpu_custom_call.1} parent=1 // pred_fallthru
      _
    // Predicated region
    $region14: #{tpu_custom_call.1} parent=1 // pred_check
      _
    $region15: #{tpu_custom_call.1} parent=1 // pred_check_branch
      %37 = sbr.rel (0) target = $region17
    $region16: #{tpu_custom_call.1} parent=1 // pred_region
      %39 = dma.done [#allocation6], 256
    $region17: #{tpu_custom_call.1} parent=1 // pred_fallthru
      _
    %v40 = vld [vmem:[#allocation2] sm:$0xff]
    %v41 = vld [vmem:[#allocation2 + $0x8] sm:$0xff]
    %v42 = vld [vmem:[#allocation5] sm:$0xff]
    %v43 = vld [vmem:[#allocation5 + $0x8] sm:$0xff]
    %v44 = vmul.f32 %v40, %v42
    %v45 = vmul.f32 %v41, %v43
    %46 = vst [vmem:[#allocation7] sm:$0xff] %v44
    %47 = vst [vmem:[#allocation7 + $0x8] sm:$0xff] %v45
    // Predicated region
    $region18: #{tpu_custom_call.1} parent=1 // pred_check
      _
    $region19: #{tpu_custom_call.1} parent=1 // pred_check_branch
      %49 = sbr.rel (0) target = $region21
    $region20: #{tpu_custom_call.1} parent=1 // pred_region
      %51 = vsyncadd [#allocation4], 0
      %s53 = sshll.u32 [#allocation7], 4
      %s54 = int_to_ptr.vmem [resolvable:$true] %s53
      %s55 = sshll.u32 %s2, 4
      %s56 = int_to_ptr.hbm [resolvable:$true] %s55
      %58 = dma.vmem_to_hbm [thread:$0]  %s54, 256, %s56, [#allocation4]
    $region21: #{tpu_custom_call.1} parent=1 // pred_fallthru
      _
    // Predicated region
    $region22: #{tpu_custom_call.1} parent=1 // pred_check
      _
    $region23: #{tpu_custom_call.1} parent=1 // pred_check_branch
      %60 = sbr.rel (0) target = $region25
    $region24: #{tpu_custom_call.1} parent=1 // pred_region
      %62 = dma.done [#allocation4], 256
    $region25: #{tpu_custom_call.1} parent=1 // pred_fallthru
      _
    %63 = vsyncpa [#allocation3], 1
    %64 = vsyncpa [#allocation6], 1
    %65 = vsyncpa [#allocation4], 1

</llo_original>
